<compile_context>
chip_gen: v7x
topology: tpu7x:2x2x1
jax: 0.10.0
libtpu: 0.0.40
codegen_flags: <defaults>
</compile_context>

<pallas_src>
import functools

import jax
import jax.numpy as jnp
from jax.experimental import pallas as pl
from jax.experimental.pallas import tpu as pltpu


def _round_up(x, m):
    return (x + m - 1) // m * m


_VMEM_BUDGET = 48 * 1024 * 1024     # fits v5e/v6e (128 MiB) and v7x (64 MiB)
_NEG_BIG = -1e30                    # additive mask value (finite: no inf*0 NaN)


# ------------------------------- Pallas kernel -------------------------------

def _fused_cnn_kernel(x_ref, w_ref, cb_ref, mask_ref, fcw_ref, fcb_ref, o_ref,
                      *, fs_max, lc, n_chunks, compute_dtype):
    # x    : (TB, T_pad, E)  f32   zero-padded activations
    # w    : (fs_max*E, NP)        taps folded into K (rows k >= fs are zero)
    # cb   : (1, NP)         f32   packed conv bias
    # mask : (Lt, NP)        f32   additive mask: 0 valid / -1e30 invalid
    # fcw  : (NP, OP)              padded FC weight
    # fcb  : (1, OP)         f32   padded FC bias
    # o    : (TB, OP)        f32   padded logits
    tb, _, e = x_ref.shape
    k_dim, n_p = w_ref.shape

    w = w_ref[...]                    # grid/loop-invariant, hoisted
    cb = cb_ref[...]

    def chunk(c, pooled):
        t0 = pl.multiple_of(c * lc, 8)
        # Rows this chunk touches; cast to the MXU compute dtype in-kernel.
        xs = x_ref[:, pl.ds(t0, lc + fs_max - 1), :].astype(compute_dtype)
        # Fold the fs_max taps into the contraction dim: (TB*Lc, fs_max*E).
        taps = [xs[:, k:k + lc, :] for k in range(fs_max)]
        im2col = jnp.concatenate(taps, axis=-1).reshape(tb * lc, k_dim)
        acc = jnp.dot(im2col, w, preferred_element_type=jnp.float32)
        acc = acc.reshape(tb, lc, n_p) + cb[None]                 # bias (f32)
        acc = jnp.maximum(acc, 0.0)                               # ReLU
        acc = acc + mask_ref[pl.ds(t0, lc), :][None]              # -1e30 mask
        return jnp.maximum(pooled, jnp.max(acc, axis=1))          # running max

    pooled0 = jnp.full((tb, n_p), _NEG_BIG, jnp.float32)
    pooled = jax.lax.fori_loop(0, n_chunks, chunk, pooled0)

    # Fused FC: packed pooled columns are already in torch.cat order; padding
    # columns hit zero FC rows.
    logits = jnp.dot(pooled.astype(fcw_ref.dtype), fcw_ref[...],
                     preferred_element_type=jnp.float32) + fcb_ref[...]
    o_ref[...] = logits.astype(o_ref.dtype)


# ------------------------------ params & packing -----------------------------

def init_params(key, embedding_dim, n_filters, filter_sizes, output_dim):
    """Raw params in PyTorch layout: Conv1d w (F,E,fs), b (F,); Linear w (O,D), b (O,)."""
    params = {"convs": [], "fc": None}
    keys = jax.random.split(key, 2 * len(filter_sizes) + 2)
    for i, fs in enumerate(filter_sizes):
        w = 0.1 * jax.random.normal(
            keys[2 * i], (n_filters, embedding_dim, fs), jnp.float32)
        b = 0.1 * jax.random.normal(keys[2 * i + 1], (n_filters,), jnp.float32)
        params["convs"].append((w, b))
    d_cat = len(filter_sizes) * n_filters
    fc_w = 0.1 * jax.random.normal(keys[-2], (output_dim, d_cat), jnp.float32)
    fc_b = 0.1 * jax.random.normal(keys[-1], (output_dim,), jnp.float32)
    params["fc"] = (fc_w, fc_b)
    return params


def pack_params(params, filter_sizes, *, compute_dtype=jnp.bfloat16):
    """Pack all filter banks into a K-folded, lane-dense, 128-padded layout."""
    convs = params["convs"]
    fc_w, fc_b = params["fc"]
    n_filters, embedding_dim, _ = convs[0][0].shape
    output_dim = fc_w.shape[0]
    fs_max = max(filter_sizes)
    n_real = len(filter_sizes) * n_filters
    n_p = _round_up(n_real, 128)
    o_p = _round_up(output_dim, 128)

    # Conv weights with taps folded into K: row = k*E + e, col = bank*F + f.
    w_pack = jnp.zeros((fs_max * embedding_dim, n_p), jnp.float32)
    cb = jnp.zeros((1, n_p), jnp.float32)
    fs_per_col = jnp.full((1, n_p), fs_max, jnp.int32)
    for i, ((w, b), fs) in enumerate(zip(convs, filter_sizes)):
        c0 = i * n_filters
        w_kef = jnp.transpose(w, (2, 1, 0)).reshape(fs * embedding_dim, n_filters)
        w_pack = w_pack.at[:fs * embedding_dim, c0:c0 + n_filters].set(w_kef)
        cb = cb.at[0, c0:c0 + n_filters].set(b)
        fs_per_col = fs_per_col.at[0, c0:c0 + n_filters].set(fs)

    fcw_pack = jnp.zeros((n_p, o_p), jnp.float32)
    fcw_pack = fcw_pack.at[:n_real, :output_dim].set(fc_w.T)
    fcb_pack = jnp.zeros((1, o_p), jnp.float32)
    fcb_pack = fcb_pack.at[0, :output_dim].set(fc_b)

    return {
        "w_pack": w_pack.astype(compute_dtype),
        "conv_bias": cb,
        "fs_per_col": fs_per_col,
        "fc_w": fcw_pack.astype(compute_dtype),
        "fc_b": fcb_pack,
    }


# ------------------------------ tiling heuristics ----------------------------

def _choose_tile_b(batch, t_pad, e, lc, fs_max, k_dim, n_p, o_p, l_total):
    """Largest batch tile fitting the VMEM budget; >= 2 grid steps when B > 8."""
    # Grid-invariant operands (double-buffered by the default pipeline).
    invariant = 2 * (k_dim * n_p * 2 + n_p * 4 + l_total * n_p * 4
                     + n_p * o_p * 2 + o_p * 4)
    # Per-batch-row bytes: double-buffered x / out blocks + in-kernel temps.
    per_row = (2 * t_pad * e * 4 + 2 * o_p * 4                 # pipeline buffers
               + (lc + fs_max - 1) * e * 2 + lc * k_dim * 2    # x chunk + im2col
               + lc * n_p * 4 + n_p * 4)                       # acc chunk + pooled
    avail = _VMEM_BUDGET - invariant - (2 << 20)               # 2 MiB slack
    tile_b = max(8, min(128, avail // per_row // 8 * 8))
    tile_b = min(tile_b, _round_up(batch, 8))
    # v7x: two TensorCores — make the 'parallel' batch grid have >= 2 steps.
    if batch > 8 and _round_up(batch, tile_b) // tile_b < 2:
        tile_b = max(8, _round_up(-(-batch // 2), 8))
    return tile_b


# --------------------------------- forward -----------------------------------

@functools.partial(jax.jit,
                   static_argnames=("fs_min", "fs_max", "output_dim", "softmax"))
def cnn1d_forward(packed, text_vec, *, fs_min, fs_max, output_dim,
                  softmax=False):
    w_pack = packed["w_pack"]           # (fs_max*E, NP)
    cb = packed["conv_bias"]            # (1, NP) f32
    fs_per_col = packed["fs_per_col"]   # (1, NP) int32
    fc_w = packed["fc_w"]               # (NP, OP)
    fc_b = packed["fc_b"]               # (1, OP) f32

    batch, seq, emb = text_vec.shape
    if seq < fs_max:
        raise ValueError("sequence length must be >= max(filter_sizes)")

    k_dim, n_p = w_pack.shape
    o_p = fc_w.shape[1]

    # Time chunking: Lc rows (multiple of 8) per in-kernel step.
    l_pad = seq - fs_min + 1                      # longest conv output
    lc = max(8, min(128, _round_up(l_pad, 8)))
    n_chunks = -(-l_pad // lc)
    l_total = n_chunks * lc
    t_pad = l_total + fs_max - 1                  # every tap slice in-bounds

    tile_b = _choose_tile_b(batch, t_pad, emb, lc, fs_max, k_dim, n_p, o_p,
                            l_total)
    b_pad = _round_up(batch, tile_b)

    # Zero-pad the raw fp32 input only; the bf16 cast happens inside the kernel.
    x = jnp.pad(text_vec, ((0, b_pad - batch), (0, t_pad - seq), (0, 0)))

    # Additive time-validity mask (0 valid / -1e30 invalid), grid-invariant.
    lens = (seq - fs_per_col + 1).astype(jnp.int32)            # (1, NP)
    t_iota = jnp.arange(l_total, dtype=jnp.int32)[:, None]     # (Lt, 1)
    add_mask = jnp.where(t_iota < lens, 0.0, _NEG_BIG).astype(jnp.float32)

    kernel = functools.partial(_fused_cnn_kernel, fs_max=fs_max, lc=lc,
                               n_chunks=n_chunks, compute_dtype=w_pack.dtype)

    out = pl.pallas_call(
        kernel,
        out_shape=jax.ShapeDtypeStruct((b_pad, o_p), jnp.float32),
        grid=(b_pad // tile_b,),
        in_specs=[
            pl.BlockSpec((tile_b, t_pad, emb), lambda i: (i, 0, 0)),
            pl.BlockSpec((k_dim, n_p), lambda i: (0, 0)),
            pl.BlockSpec((1, n_p), lambda i: (0, 0)),
            pl.BlockSpec((l_total, n_p), lambda i: (0, 0)),
            pl.BlockSpec((n_p, o_p), lambda i: (0, 0)),
            pl.BlockSpec((1, o_p), lambda i: (0, 0)),
        ],
        out_specs=pl.BlockSpec((tile_b, o_p), lambda i: (i, 0)),
        compiler_params=pltpu.CompilerParams(
            dimension_semantics=("parallel",),
            vmem_limit_bytes=_VMEM_BUDGET),
    )(x, w_pack, cb, add_mask, fc_w, fc_b)

    logits = out[:batch, :output_dim]
    if softmax:
        return jax.nn.softmax(logits, axis=1)
    return logits


# ------------------------------ plain-JAX reference --------------------------

def reference_forward(params, text_vec, filter_sizes, softmax=False):
    pooled = []
    for (w, b), fs in zip(params["convs"], filter_sizes):
        L = text_vec.shape[1] - fs + 1
        taps = jnp.stack([text_vec[:, k:k + L, :] for k in range(fs)], axis=-1)
        conv = jnp.einsum("blek,fek->blf", taps, w) + b[None, None, :]
        pooled.append(jnp.max(jax.nn.relu(conv), axis=1))
    cat = jnp.concatenate(pooled, axis=1)
    fc_w, fc_b = params["fc"]
    logits = cat @ fc_w.T + fc_b[None, :]
    if softmax:
        return jax.nn.softmax(logits, axis=1)
    return logits


# ----------------------------------- main ------------------------------------

if __name__ == "__main__":
    B, T = 2, 16
    embedding_dim = 32
    n_filters = 8
    filter_sizes = (3, 4, 5)
    output_dim = 4

    key = jax.random.PRNGKey(0)
    k_params, k_x = jax.random.split(key)
    params = init_params(k_params, embedding_dim, n_filters, filter_sizes,
                         output_dim)
    text_vec = jax.random.normal(k_x, (B, T, embedding_dim), jnp.float32)

    fwd_kwargs = dict(fs_min=min(filter_sizes), fs_max=max(filter_sizes),
                      output_dim=output_dim)

    ref = reference_forward(params, text_vec, filter_sizes)

    # fp32 operands (test-only path).
    packed_f32 = pack_params(params, filter_sizes, compute_dtype=jnp.float32)
    out_f32 = cnn1d_forward(packed_f32, text_vec, softmax=False, **fwd_kwargs)
    jax.block_until_ready(out_f32)
    assert out_f32.shape == (B, output_dim)
    assert jnp.allclose(out_f32, ref, rtol=1e-1, atol=1e-1), \
        f"fp32 mismatch: {jnp.max(jnp.abs(out_f32 - ref))}"

    # bf16 matmul operands / f32 accumulation (v5e/v6e/v7x MXU fast path).
    packed_bf16 = pack_params(params, filter_sizes, compute_dtype=jnp.bfloat16)
    out_bf16 = cnn1d_forward(packed_bf16, text_vec, softmax=False, **fwd_kwargs)
    jax.block_until_ready(out_bf16)
    assert out_bf16.shape == (B, output_dim)
    assert jnp.allclose(out_bf16, ref, rtol=1.5e-1, atol=1.5e-1), \
        f"bf16 mismatch: {jnp.max(jnp.abs(out_bf16 - ref))}"

    out_sm = cnn1d_forward(packed_bf16, text_vec, softmax=True, **fwd_kwargs)
    jax.block_until_ready(out_sm)
    assert out_sm.shape == (B, output_dim)

    print("KERNEL_OK")
</pallas_src>

<mosaic_0001>
module attributes {stable_mosaic.version = 11 : i64} {
  func.func @_fused_cnn_kernel(%arg0: i32, %arg1: memref<8x20x32xf32, #tpu.memory_space<vmem>>, %arg2: memref<160x128xf32, #tpu.memory_space<vmem>>, %arg3: memref<1x128xf32, #tpu.memory_space<vmem>>, %arg4: memref<16x128xf32, #tpu.memory_space<vmem>>, %arg5: memref<128x128xf32, #tpu.memory_space<vmem>>, %arg6: memref<1x128xf32, #tpu.memory_space<vmem>>, %arg7: memref<8x128xf32, #tpu.memory_space<vmem>>) attributes {dimension_semantics = [#tpu.dimension_semantics<parallel>], iteration_bounds = array<i64: 1>, scalar_prefetch = 0 : i64, scratch_operands = 0 : i64, tpu.core_type = #tpu.core_type<tc>, window_params = [{transform_indices = @transform_0, window_bounds = array<i64: 8, 20, 32>}, {pipeline_mode = #tpu.pipeline_mode<synchronous>, transform_indices = @transform_1, window_bounds = array<i64: 160, 128>}, {pipeline_mode = #tpu.pipeline_mode<synchronous>, transform_indices = @transform_2, window_bounds = array<i64: 1, 128>}, {pipeline_mode = #tpu.pipeline_mode<synchronous>, transform_indices = @transform_3, window_bounds = array<i64: 16, 128>}, {pipeline_mode = #tpu.pipeline_mode<synchronous>, transform_indices = @transform_4, window_bounds = array<i64: 128, 128>}, {pipeline_mode = #tpu.pipeline_mode<synchronous>, transform_indices = @transform_5, window_bounds = array<i64: 1, 128>}, {transform_indices = @transform_6, window_bounds = array<i64: 8, 128>}]} {
    %c0 = arith.constant 0 : index
    %c0_0 = arith.constant 0 : index
    %0 = vector.load %arg2[%c0, %c0_0] : memref<160x128xf32, #tpu.memory_space<vmem>>, vector<160x128xf32>
    %c0_1 = arith.constant 0 : index
    %c0_2 = arith.constant 0 : index
    %1 = vector.load %arg3[%c0_1, %c0_2] : memref<1x128xf32, #tpu.memory_space<vmem>>, vector<1x128xf32>
    %cst = arith.constant -1.000000e+30 : f32
    %2 = vector.broadcast %cst : f32 to vector<8x128xf32>
    %c0_i32 = arith.constant 0 : i32
    %c16_i32 = arith.constant 16 : i32
    %3 = arith.muli %c0_i32, %c16_i32 : i32
    %4 = tpu.assume_multiple %3, 8 : i32
    %c0_3 = arith.constant 0 : index
    %5 = arith.index_cast %4 : i32 to index
    %c0_4 = arith.constant 0 : index
    %6 = vector.load %arg1[%c0_3, %5, %c0_4] : memref<8x20x32xf32, #tpu.memory_space<vmem>>, vector<8x20x32xf32>
    %7 = vector.extract_strided_slice %6 {offsets = [0, 0, 0], sizes = [8, 16, 32], strides = [1, 1, 1]} : vector<8x20x32xf32> to vector<8x16x32xf32>
    %8 = vector.extract_strided_slice %6 {offsets = [0, 1, 0], sizes = [8, 16, 32], strides = [1, 1, 1]} : vector<8x20x32xf32> to vector<8x16x32xf32>
    %9 = vector.extract_strided_slice %6 {offsets = [0, 2, 0], sizes = [8, 16, 32], strides = [1, 1, 1]} : vector<8x20x32xf32> to vector<8x16x32xf32>
    %10 = vector.extract_strided_slice %6 {offsets = [0, 3, 0], sizes = [8, 16, 32], strides = [1, 1, 1]} : vector<8x20x32xf32> to vector<8x16x32xf32>
    %11 = vector.extract_strided_slice %6 {offsets = [0, 4, 0], sizes = [8, 16, 32], strides = [1, 1, 1]} : vector<8x20x32xf32> to vector<8x16x32xf32>
    %12 = tpu.concatenate %7, %8, %9, %10, %11 in 2 : vector<8x16x32xf32>, vector<8x16x32xf32>, vector<8x16x32xf32>, vector<8x16x32xf32>, vector<8x16x32xf32> -> vector<8x16x160xf32>
    %13 = vector.shape_cast %12 : vector<8x16x160xf32> to vector<128x160xf32>
    %cst_5 = arith.constant dense<0.000000e+00> : vector<128x128xf32>
    %14 = tpu.matmul %13, %0, %cst_5 {dimension_numbers = #tpu.dot_dimension_numbers<[1], [0], [0], [1], [0, 0, 1, 1], [], []>} : vector<128x160xf32>, vector<160x128xf32>, vector<128x128xf32> -> vector<128x128xf32>
    %15 = vector.shape_cast %14 : vector<128x128xf32> to vector<8x16x128xf32>
    %16 = vector.shape_cast %1 : vector<1x128xf32> to vector<1x1x128xf32>
    %17 = vector.broadcast %16 : vector<1x1x128xf32> to vector<8x16x128xf32>
    %18 = arith.addf %15, %17 : vector<8x16x128xf32>
    %cst_6 = arith.constant 0.000000e+00 : f32
    %19 = vector.broadcast %cst_6 : f32 to vector<8x16x128xf32>
    %20 = arith.maximumf %18, %19 : vector<8x16x128xf32>
    %21 = arith.index_cast %4 : i32 to index
    %c0_7 = arith.constant 0 : index
    %22 = vector.load %arg4[%21, %c0_7] : memref<16x128xf32, #tpu.memory_space<vmem>>, vector<16x128xf32>
    %23 = vector.shape_cast %22 : vector<16x128xf32> to vector<1x16x128xf32>
    %24 = vector.broadcast %23 : vector<1x16x128xf32> to vector<8x16x128xf32>
    %25 = arith.addf %20, %24 : vector<8x16x128xf32>
    %cst_8 = arith.constant dense<0xFF800000> : vector<8x128xf32>
    %26 = vector.multi_reduction <maximumf>, %25, %cst_8 [1] : vector<8x16x128xf32> to vector<8x128xf32>
    %27 = arith.maximumf %2, %26 : vector<8x128xf32>
    %c1_i32 = arith.constant 1 : i32
    %c0_9 = arith.constant 0 : index
    %c0_10 = arith.constant 0 : index
    %28 = vector.load %arg5[%c0_9, %c0_10] : memref<128x128xf32, #tpu.memory_space<vmem>>, vector<128x128xf32>
    %cst_11 = arith.constant dense<0.000000e+00> : vector<8x128xf32>
    %29 = tpu.matmul %27, %28, %cst_11 {dimension_numbers = #tpu.dot_dimension_numbers<[1], [0], [0], [1], [0, 0, 1, 1], [], []>} : vector<8x128xf32>, vector<128x128xf32>, vector<8x128xf32> -> vector<8x128xf32>
    %c0_12 = arith.constant 0 : index
    %c0_13 = arith.constant 0 : index
    %30 = vector.load %arg6[%c0_12, %c0_13] : memref<1x128xf32, #tpu.memory_space<vmem>>, vector<1x128xf32>
    %31 = vector.broadcast %30 : vector<1x128xf32> to vector<8x128xf32>
    %32 = arith.addf %29, %31 : vector<8x128xf32>
    %c0_14 = arith.constant 0 : index
    %c0_15 = arith.constant 0 : index
    %33 = vector.load %arg7[%c0_14, %c0_15] : memref<8x128xf32, #tpu.memory_space<vmem>>, vector<8x128xf32>
    tpu.vector_store %arg7[%c0_14, %c0_15], %32 {strides = array<i32>} : memref<8x128xf32, #tpu.memory_space<vmem>>, vector<8x128xf32>,
    return
  }
  func.func @transform_0(%arg0: i32) -> (i32, i32, i32) {
    %c0_i32 = arith.constant 0 : i32
    %c0_i32_0 = arith.constant 0 : i32
    %c0_i32_1 = arith.constant 0 : i32
    return %arg0, %c0_i32, %c0_i32_0 : i32, i32, i32
  }
  func.func @transform_1(%arg0: i32) -> (i32, i32) {
    %c0_i32 = arith.constant 0 : i32
    %c0_i32_0 = arith.constant 0 : i32
    %c0_i32_1 = arith.constant 0 : i32
    return %c0_i32, %c0_i32_0 : i32, i32
  }
  func.func @transform_2(%arg0: i32) -> (i32, i32) {
    %c0_i32 = arith.constant 0 : i32
    %c0_i32_0 = arith.constant 0 : i32
    %c0_i32_1 = arith.constant 0 : i32
    return %c0_i32, %c0_i32_0 : i32, i32
  }
  func.func @transform_3(%arg0: i32) -> (i32, i32) {
    %c0_i32 = arith.constant 0 : i32
    %c0_i32_0 = arith.constant 0 : i32
    %c0_i32_1 = arith.constant 0 : i32
    return %c0_i32, %c0_i32_0 : i32, i32
  }
  func.func @transform_4(%arg0: i32) -> (i32, i32) {
    %c0_i32 = arith.constant 0 : i32
    %c0_i32_0 = arith.constant 0 : i32
    %c0_i32_1 = arith.constant 0 : i32
    return %c0_i32, %c0_i32_0 : i32, i32
  }
  func.func @transform_5(%arg0: i32) -> (i32, i32) {
    %c0_i32 = arith.constant 0 : i32
    %c0_i32_0 = arith.constant 0 : i32
    %c0_i32_1 = arith.constant 0 : i32
    return %c0_i32, %c0_i32_0 : i32, i32
  }
  func.func @transform_6(%arg0: i32) -> (i32, i32) {
    %c0_i32 = arith.constant 0 : i32
    %c0_i32_0 = arith.constant 0 : i32
    return %arg0, %c0_i32 : i32, i32
  }
}

</mosaic_0001>

<llo_original>
// kernel: cnn1d_forward.1
$region0: #{cnn1d_forward.1}
  #allocation0 [shape = 'u32[]', space=smem, size = 0x4, offset = 0x4, fixed_abs, tag = 'smem constant byte address 0x4 - core index']
  #allocation1 [shape = 'u32[144,128]{1,0:T(1,128)}', space=vmem, size = 0x12000, scoped, tag = 'internal scratch']
  %s0 = inlined_call_operand.vmem [shape: f32[8,20,32], index: 0, kind: input, shape index: {}]
  %s1 = inlined_call_operand.vmem [shape: f32[160,128], index: 1, kind: input, shape index: {}]
  %s2 = inlined_call_operand.vmem [shape: f32[1,128], index: 2, kind: input, shape index: {}]
  %s3 = inlined_call_operand.vmem [shape: f32[16,128], index: 3, kind: input, shape index: {}]
  %s4 = inlined_call_operand.hbm [shape: f32[128,128], index: 4, kind: input, shape index: {}]
  %s5 = inlined_call_operand.vmem [shape: f32[1,128], index: 5, kind: input, shape index: {}]
  %s6 = inlined_call_operand.vmem [shape: f32[8,128], index: 6, kind: output, shape index: {}]
  %s7 = sld [smem:[#allocation0]]
  $region38: #{cnn1d_forward.1} parent=0
    _
  %s9 = ssub.s32 1, %s7
  %s10 = scalar_select 0, %s9, %s7
  $region1: #{cnn1d_forward.1} parent=0
    #allocation2 [shape = 'u8[65536]{0}', space=vmem, size = 0x10000, scoped, tag = 'input window, operand 4, single buffered']
    #allocation3 [shape = 's32[1]{0}', space=sflag, size = 0x4, scoped, tag = 'scoped memory for cnn1d_forward.1']
    %11 = vsyncpa [#allocation3], 0
    // Predicated region
    $region2: #{cnn1d_forward.1} parent=1 // pred_check
      _
    $region3: #{cnn1d_forward.1} parent=1 // pred_check_branch
      %13 = sbr.rel (0) target = $region5
    $region4: #{cnn1d_forward.1} parent=1 // pred_region
      _
    $region5: #{cnn1d_forward.1} parent=1 // pred_fallthru
      _
    // Predicated region
    $region6: #{cnn1d_forward.1} parent=1 // pred_check
      _
    $region7: #{cnn1d_forward.1} parent=1 // pred_check_branch
      %15 = sbr.rel (0) target = $region9
    $region8: #{cnn1d_forward.1} parent=1 // pred_region
      _
    $region9: #{cnn1d_forward.1} parent=1 // pred_fallthru
      _
    // Predicated region
    $region10: #{cnn1d_forward.1} parent=1 // pred_check
      _
    $region11: #{cnn1d_forward.1} parent=1 // pred_check_branch
      %17 = sbr.rel (0) target = $region13
    $region12: #{cnn1d_forward.1} parent=1 // pred_region
      _
    $region13: #{cnn1d_forward.1} parent=1 // pred_fallthru
      _
    // Predicated region
    $region14: #{cnn1d_forward.1} parent=1 // pred_check
      _
    $region15: #{cnn1d_forward.1} parent=1 // pred_check_branch
      %19 = sbr.rel (0) target = $region17
    $region16: #{cnn1d_forward.1} parent=1 // pred_region
      _
    $region17: #{cnn1d_forward.1} parent=1 // pred_fallthru
      _
    // Predicated region
    $region18: #{cnn1d_forward.1} parent=1 // pred_check
      _
    $region19: #{cnn1d_forward.1} parent=1 // pred_check_branch
      %21 = sbr.rel (0) target = $region21
    $region20: #{cnn1d_forward.1} parent=1 // pred_region
      %s23 = ssub.s32 2048, 2048
      %24 = vsyncadd [#allocation3], %s23
      %s25 = sshll.u32 [#allocation2], 4
      %s26 = int_to_ptr.vmem [resolvable:$true] %s25
      %31 = dma.hbm_to_vmem [thread:$0]  %s4, 2048, %s26, [#allocation3], 128, 128, 8
    $region21: #{cnn1d_forward.1} parent=1 // pred_fallthru
      _
    // Predicated region
    $region22: #{cnn1d_forward.1} parent=1 // pred_check
      _
    $region23: #{cnn1d_forward.1} parent=1 // pred_check_branch
      %33 = sbr.rel (0) target = $region25
    $region24: #{cnn1d_forward.1} parent=1 // pred_region
      _
    $region25: #{cnn1d_forward.1} parent=1 // pred_fallthru
      _
    // Predicated region
    $region26: #{cnn1d_forward.1} parent=1 // pred_check
      _
    $region27: #{cnn1d_forward.1} parent=1 // pred_check_branch
      %35 = sbr.rel (0) target = $region29
    $region28: #{cnn1d_forward.1} parent=1 // pred_region
      %36 = dma.done [#allocation3], 2048
    $region29: #{cnn1d_forward.1} parent=1 // pred_fallthru
      _
    %v37 = vld [vmem:[%s1] sm:$0xff]
    %v38 = vld [vmem:[%s1 + $0x8] sm:$0xff]
    %v39 = vld [vmem:[%s1 + $0x10] sm:$0xff]
    %v40 = vld [vmem:[%s1 + $0x18] sm:$0xff]
    %v41 = vld [vmem:[%s1 + $0x20] sm:$0xff]
    %v42 = vld [vmem:[%s1 + $0x28] sm:$0xff]
    %v43 = vld [vmem:[%s1 + $0x30] sm:$0xff]
    %v44 = vld [vmem:[%s1 + $0x38] sm:$0xff]
    %v45 = vld [vmem:[%s1 + $0x40] sm:$0xff]
    %v46 = vld [vmem:[%s1 + $0x48] sm:$0xff]
    %v47 = vld [vmem:[%s1 + $0x50] sm:$0xff]
    %v48 = vld [vmem:[%s1 + $0x58] sm:$0xff]
    %v49 = vld [vmem:[%s1 + $0x60] sm:$0xff]
    %v50 = vld [vmem:[%s1 + $0x68] sm:$0xff]
    %v51 = vld [vmem:[%s1 + $0x70] sm:$0xff]
    %v52 = vld [vmem:[%s1 + $0x78] sm:$0xff]
    %v53 = vld [vmem:[%s1 + $0x80] sm:$0xff]
    %v54 = vld [vmem:[%s1 + $0x88] sm:$0xff]
    %v55 = vld [vmem:[%s1 + $0x90] sm:$0xff]
    %v56 = vld [vmem:[%s1 + $0x98] sm:$0xff]
    %v57 = vld [vmem:[%s2] sm:$0x1]
    %v58 = vld [vmem:[%s0] sm:$0xff]
    %v59 = vld [vmem:[%s0 + $0x8] sm:$0xff]
    %v60 = vld [vmem:[%s0 + $0x10] sm:$0xf]
    %v61 = vld [vmem:[%s0 + $0x18] sm:$0xff]
    %v62 = vld [vmem:[%s0 + $0x20] sm:$0xff]
    %v63 = vld [vmem:[%s0 + $0x28] sm:$0xf]
    %v64 = vld [vmem:[%s0 + $0x30] sm:$0xff]
    %v65 = vld [vmem:[%s0 + $0x38] sm:$0xff]
    %v66 = vld [vmem:[%s0 + $0x40] sm:$0xf]
    %v67 = vld [vmem:[%s0 + $0x48] sm:$0xff]
    %v68 = vld [vmem:[%s0 + $0x50] sm:$0xff]
    %v69 = vld [vmem:[%s0 + $0x58] sm:$0xf]
    %v70 = vld [vmem:[%s0 + $0x60] sm:$0xff]
    %v71 = vld [vmem:[%s0 + $0x68] sm:$0xff]
    %v72 = vld [vmem:[%s0 + $0x70] sm:$0xf]
    %v73 = vld [vmem:[%s0 + $0x78] sm:$0xff]
    %v74 = vld [vmem:[%s0 + $0x80] sm:$0xff]
    %v75 = vld [vmem:[%s0 + $0x88] sm:$0xf]
    %v76 = vld [vmem:[%s0 + $0x90] sm:$0xff]
    %v77 = vld [vmem:[%s0 + $0x98] sm:$0xff]
    %v78 = vld [vmem:[%s0 + $0xa0] sm:$0xf]
    %v79 = vld [vmem:[%s0 + $0xa8] sm:$0xff]
    %v80 = vld [vmem:[%s0 + $0xb0] sm:$0xff]
    %v81 = vld [vmem:[%s0 + $0xb8] sm:$0xf]
    %vm106 = vcmask 1046528
    %v107 = vrot.slane %v58, 1
    %v108 = vrot.slane %v59, 1
    %v109 = vsel %vm106, %v107, %v108
    %v110 = vrot.slane %v60, 1
    %v111 = vsel %vm106, %v108, %v110
    %v112 = vrot.slane %v61, 1
    %v113 = vrot.slane %v62, 1
    %v114 = vsel %vm106, %v112, %v113
    %v115 = vrot.slane %v63, 1
    %v116 = vsel %vm106, %v113, %v115
    %v117 = vrot.slane %v64, 1
    %v118 = vrot.slane %v65, 1
    %v119 = vsel %vm106, %v117, %v118
    %v120 = vrot.slane %v66, 1
    %v121 = vsel %vm106, %v118, %v120
    %v122 = vrot.slane %v67, 1
    %v123 = vrot.slane %v68, 1
    %v124 = vsel %vm106, %v122, %v123
    %v125 = vrot.slane %v69, 1
    %v126 = vsel %vm106, %v123, %v125
    %v127 = vrot.slane %v70, 1
    %v128 = vrot.slane %v71, 1
    %v129 = vsel %vm106, %v127, %v128
    %v130 = vrot.slane %v72, 1
    %v131 = vsel %vm106, %v128, %v130
    %v132 = vrot.slane %v73, 1
    %v133 = vrot.slane %v74, 1
    %v134 = vsel %vm106, %v132, %v133
    %v135 = vrot.slane %v75, 1
    %v136 = vsel %vm106, %v133, %v135
    %v137 = vrot.slane %v76, 1
    %v138 = vrot.slane %v77, 1
    %v139 = vsel %vm106, %v137, %v138
    %v140 = vrot.slane %v78, 1
    %v141 = vsel %vm106, %v138, %v140
    %v142 = vrot.slane %v79, 1
    %v143 = vrot.slane %v80, 1
    %v144 = vsel %vm106, %v142, %v143
    %v145 = vrot.slane %v81, 1
    %v146 = vsel %vm106, %v143, %v145
    %147 = vrot.lane.b32.xlu0 %v109, 32
    %v148 = vpop.permute.xlu0 %147
    %149 = vrot.lane.b32.xlu0 %v111, 32
    %v150 = vpop.permute.xlu0 %149
    %151 = vrot.lane.b32.xlu0 %v114, 32
    %v152 = vpop.permute.xlu0 %151
    %153 = vrot.lane.b32.xlu0 %v116, 32
    %v154 = vpop.permute.xlu0 %153
    %155 = vrot.lane.b32.xlu0 %v119, 32
    %v156 = vpop.permute.xlu0 %155
    %157 = vrot.lane.b32.xlu0 %v121, 32
    %v158 = vpop.permute.xlu0 %157
    %159 = vrot.lane.b32.xlu0 %v124, 32
    %v160 = vpop.permute.xlu0 %159
    %161 = vrot.lane.b32.xlu0 %v126, 32
    %v162 = vpop.permute.xlu0 %161
    %163 = vrot.lane.b32.xlu0 %v129, 32
    %v164 = vpop.permute.xlu0 %163
    %165 = vrot.lane.b32.xlu0 %v131, 32
    %v166 = vpop.permute.xlu0 %165
    %167 = vrot.lane.b32.xlu0 %v134, 32
    %v168 = vpop.permute.xlu0 %167
    %169 = vrot.lane.b32.xlu0 %v136, 32
    %v170 = vpop.permute.xlu0 %169
    %171 = vrot.lane.b32.xlu0 %v139, 32
    %v172 = vpop.permute.xlu0 %171
    %173 = vrot.lane.b32.xlu0 %v141, 32
    %v174 = vpop.permute.xlu0 %173
    %175 = vrot.lane.b32.xlu0 %v144, 32
    %v176 = vpop.permute.xlu0 %175
    %177 = vrot.lane.b32.xlu0 %v146, 32
    %v178 = vpop.permute.xlu0 %177
    %vm195 = vcmask 1045504
    %v196 = vrot.slane %v58, 2
    %v197 = vrot.slane %v59, 2
    %v198 = vsel %vm195, %v196, %v197
    %v199 = vrot.slane %v60, 2
    %v200 = vsel %vm195, %v197, %v199
    %v201 = vrot.slane %v61, 2
    %v202 = vrot.slane %v62, 2
    %v203 = vsel %vm195, %v201, %v202
    %v204 = vrot.slane %v63, 2
    %v205 = vsel %vm195, %v202, %v204
    %v206 = vrot.slane %v64, 2
    %v207 = vrot.slane %v65, 2
    %v208 = vsel %vm195, %v206, %v207
    %v209 = vrot.slane %v66, 2
    %v210 = vsel %vm195, %v207, %v209
    %v211 = vrot.slane %v67, 2
    %v212 = vrot.slane %v68, 2
    %v213 = vsel %vm195, %v211, %v212
    %v214 = vrot.slane %v69, 2
    %v215 = vsel %vm195, %v212, %v214
    %v216 = vrot.slane %v70, 2
    %v217 = vrot.slane %v71, 2
    %v218 = vsel %vm195, %v216, %v217
    %v219 = vrot.slane %v72, 2
    %v220 = vsel %vm195, %v217, %v219
    %v221 = vrot.slane %v73, 2
    %v222 = vrot.slane %v74, 2
    %v223 = vsel %vm195, %v221, %v222
    %v224 = vrot.slane %v75, 2
    %v225 = vsel %vm195, %v222, %v224
    %v226 = vrot.slane %v76, 2
    %v227 = vrot.slane %v77, 2
    %v228 = vsel %vm195, %v226, %v227
    %v229 = vrot.slane %v78, 2
    %v230 = vsel %vm195, %v227, %v229
    %v231 = vrot.slane %v79, 2
    %v232 = vrot.slane %v80, 2
    %v233 = vsel %vm195, %v231, %v232
    %v234 = vrot.slane %v81, 2
    %v235 = vsel %vm195, %v232, %v234
    %236 = vrot.lane.b32.xlu0 %v198, 64
    %v237 = vpop.permute.xlu0 %236
    %238 = vrot.lane.b32.xlu0 %v200, 64
    %v239 = vpop.permute.xlu0 %238
    %240 = vrot.lane.b32.xlu0 %v203, 64
    %v241 = vpop.permute.xlu0 %240
    %242 = vrot.lane.b32.xlu0 %v205, 64
    %v243 = vpop.permute.xlu0 %242
    %244 = vrot.lane.b32.xlu0 %v208, 64
    %v245 = vpop.permute.xlu0 %244
    %246 = vrot.lane.b32.xlu0 %v210, 64
    %v247 = vpop.permute.xlu0 %246
    %248 = vrot.lane.b32.xlu0 %v213, 64
    %v249 = vpop.permute.xlu0 %248
    %250 = vrot.lane.b32.xlu0 %v215, 64
    %v251 = vpop.permute.xlu0 %250
    %252 = vrot.lane.b32.xlu0 %v218, 64
    %v253 = vpop.permute.xlu0 %252
    %254 = vrot.lane.b32.xlu0 %v220, 64
    %v255 = vpop.permute.xlu0 %254
    %256 = vrot.lane.b32.xlu0 %v223, 64
    %v257 = vpop.permute.xlu0 %256
    %258 = vrot.lane.b32.xlu0 %v225, 64
    %v259 = vpop.permute.xlu0 %258
    %260 = vrot.lane.b32.xlu0 %v228, 64
    %v261 = vpop.permute.xlu0 %260
    %262 = vrot.lane.b32.xlu0 %v230, 64
    %v263 = vpop.permute.xlu0 %262
    %264 = vrot.lane.b32.xlu0 %v233, 64
    %v265 = vpop.permute.xlu0 %264
    %266 = vrot.lane.b32.xlu0 %v235, 64
    %v267 = vpop.permute.xlu0 %266
    %vm284 = vcmask 1044480
    %v285 = vrot.slane %v58, 3
    %v286 = vrot.slane %v59, 3
    %v287 = vsel %vm284, %v285, %v286
    %v288 = vrot.slane %v60, 3
    %v289 = vsel %vm284, %v286, %v288
    %v290 = vrot.slane %v61, 3
    %v291 = vrot.slane %v62, 3
    %v292 = vsel %vm284, %v290, %v291
    %v293 = vrot.slane %v63, 3
    %v294 = vsel %vm284, %v291, %v293
    %v295 = vrot.slane %v64, 3
    %v296 = vrot.slane %v65, 3
    %v297 = vsel %vm284, %v295, %v296
    %v298 = vrot.slane %v66, 3
    %v299 = vsel %vm284, %v296, %v298
    %v300 = vrot.slane %v67, 3
    %v301 = vrot.slane %v68, 3
    %v302 = vsel %vm284, %v300, %v301
    %v303 = vrot.slane %v69, 3
    %v304 = vsel %vm284, %v301, %v303
    %v305 = vrot.slane %v70, 3
    %v306 = vrot.slane %v71, 3
    %v307 = vsel %vm284, %v305, %v306
    %v308 = vrot.slane %v72, 3
    %v309 = vsel %vm284, %v306, %v308
    %v310 = vrot.slane %v73, 3
    %v311 = vrot.slane %v74, 3
    %v312 = vsel %vm284, %v310, %v311
    %v313 = vrot.slane %v75, 3
    %v314 = vsel %vm284, %v311, %v313
    %v315 = vrot.slane %v76, 3
    %v316 = vrot.slane %v77, 3
    %v317 = vsel %vm284, %v315, %v316
    %v318 = vrot.slane %v78, 3
    %v319 = vsel %vm284, %v316, %v318
    %v320 = vrot.slane %v79, 3
    %v321 = vrot.slane %v80, 3
    %v322 = vsel %vm284, %v320, %v321
    %v323 = vrot.slane %v81, 3
    %v324 = vsel %vm284, %v321, %v323
    %325 = vrot.lane.b32.xlu0 %v287, 96
    %v326 = vpop.permute.xlu0 %325
    %327 = vrot.lane.b32.xlu0 %v289, 96
    %v328 = vpop.permute.xlu0 %327
    %329 = vrot.lane.b32.xlu0 %v292, 96
    %v330 = vpop.permute.xlu0 %329
    %331 = vrot.lane.b32.xlu0 %v294, 96
    %v332 = vpop.permute.xlu0 %331
    %333 = vrot.lane.b32.xlu0 %v297, 96
    %v334 = vpop.permute.xlu0 %333
    %335 = vrot.lane.b32.xlu0 %v299, 96
    %v336 = vpop.permute.xlu0 %335
    %337 = vrot.lane.b32.xlu0 %v302, 96
    %v338 = vpop.permute.xlu0 %337
    %339 = vrot.lane.b32.xlu0 %v304, 96
    %v340 = vpop.permute.xlu0 %339
    %341 = vrot.lane.b32.xlu0 %v307, 96
    %v342 = vpop.permute.xlu0 %341
    %343 = vrot.lane.b32.xlu0 %v309, 96
    %v344 = vpop.permute.xlu0 %343
    %345 = vrot.lane.b32.xlu0 %v312, 96
    %v346 = vpop.permute.xlu0 %345
    %347 = vrot.lane.b32.xlu0 %v314, 96
    %v348 = vpop.permute.xlu0 %347
    %349 = vrot.lane.b32.xlu0 %v317, 96
    %v350 = vpop.permute.xlu0 %349
    %351 = vrot.lane.b32.xlu0 %v319, 96
    %v352 = vpop.permute.xlu0 %351
    %353 = vrot.lane.b32.xlu0 %v322, 96
    %v354 = vpop.permute.xlu0 %353
    %355 = vrot.lane.b32.xlu0 %v324, 96
    %v356 = vpop.permute.xlu0 %355
    %vm373 = vcmask 1043456
    %v374 = vrot.slane %v58, 4
    %v375 = vrot.slane %v59, 4
    %v376 = vsel %vm373, %v374, %v375
    %v377 = vrot.slane %v60, 4
    %v378 = vsel %vm373, %v375, %v377
    %v379 = vrot.slane %v61, 4
    %v380 = vrot.slane %v62, 4
    %v381 = vsel %vm373, %v379, %v380
    %v382 = vrot.slane %v63, 4
    %v383 = vsel %vm373, %v380, %v382
    %v384 = vrot.slane %v64, 4
    %v385 = vrot.slane %v65, 4
    %v386 = vsel %vm373, %v384, %v385
    %v387 = vrot.slane %v66, 4
    %v388 = vsel %vm373, %v385, %v387
    %v389 = vrot.slane %v67, 4
    %v390 = vrot.slane %v68, 4
    %v391 = vsel %vm373, %v389, %v390
    %v392 = vrot.slane %v69, 4
    %v393 = vsel %vm373, %v390, %v392
    %v394 = vrot.slane %v70, 4
    %v395 = vrot.slane %v71, 4
    %v396 = vsel %vm373, %v394, %v395
    %v397 = vrot.slane %v72, 4
    %v398 = vsel %vm373, %v395, %v397
    %v399 = vrot.slane %v73, 4
    %v400 = vrot.slane %v74, 4
    %v401 = vsel %vm373, %v399, %v400
    %v402 = vrot.slane %v75, 4
    %v403 = vsel %vm373, %v400, %v402
    %v404 = vrot.slane %v76, 4
    %v405 = vrot.slane %v77, 4
    %v406 = vsel %vm373, %v404, %v405
    %v407 = vrot.slane %v78, 4
    %v408 = vsel %vm373, %v405, %v407
    %v409 = vrot.slane %v79, 4
    %v410 = vrot.slane %v80, 4
    %v411 = vsel %vm373, %v409, %v410
    %v412 = vrot.slane %v81, 4
    %v413 = vsel %vm373, %v410, %v412
    %vm414 = vcmask 261120
    %v415 = vsel %vm414, %v58, %v148
    %v416 = vsel %vm414, %v59, %v150
    %v417 = vsel %vm414, %v61, %v152
    %v418 = vsel %vm414, %v62, %v154
    %v419 = vsel %vm414, %v64, %v156
    %v420 = vsel %vm414, %v65, %v158
    %v421 = vsel %vm414, %v67, %v160
    %v422 = vsel %vm414, %v68, %v162
    %v423 = vsel %vm414, %v70, %v164
    %v424 = vsel %vm414, %v71, %v166
    %v425 = vsel %vm414, %v73, %v168
    %v426 = vsel %vm414, %v74, %v170
    %v427 = vsel %vm414, %v76, %v172
    %v428 = vsel %vm414, %v77, %v174
    %v429 = vsel %vm414, %v79, %v176
    %v430 = vsel %vm414, %v80, %v178
    %vm431 = vcmask 523264
    %v432 = vsel %vm431, %v415, %v237
    %v433 = vsel %vm431, %v416, %v239
    %v434 = vsel %vm431, %v417, %v241
    %v435 = vsel %vm431, %v418, %v243
    %v436 = vsel %vm431, %v419, %v245
    %v437 = vsel %vm431, %v420, %v247
    %v438 = vsel %vm431, %v421, %v249
    %v439 = vsel %vm431, %v422, %v251
    %v440 = vsel %vm431, %v423, %v253
    %v441 = vsel %vm431, %v424, %v255
    %v442 = vsel %vm431, %v425, %v257
    %v443 = vsel %vm431, %v426, %v259
    %v444 = vsel %vm431, %v427, %v261
    %v445 = vsel %vm431, %v428, %v263
    %v446 = vsel %vm431, %v429, %v265
    %v447 = vsel %vm431, %v430, %v267
    %vm448 = vcmask 785408
    %v449 = vsel %vm448, %v432, %v326
    %v450 = vsel %vm448, %v433, %v328
    %v451 = vsel %vm448, %v434, %v330
    %v452 = vsel %vm448, %v435, %v332
    %v453 = vsel %vm448, %v436, %v334
    %v454 = vsel %vm448, %v437, %v336
    %v455 = vsel %vm448, %v438, %v338
    %v456 = vsel %vm448, %v439, %v340
    %v457 = vsel %vm448, %v440, %v342
    %v458 = vsel %vm448, %v441, %v344
    %v459 = vsel %vm448, %v442, %v346
    %v460 = vsel %vm448, %v443, %v348
    %v461 = vsel %vm448, %v444, %v350
    %v462 = vsel %vm448, %v445, %v352
    %v463 = vsel %vm448, %v446, %v354
    %v464 = vsel %vm448, %v447, %v356
    %v465 = vsel %vm414, %v376, 0
    %v467 = vsel %vm414, %v378, 0
    %v469 = vsel %vm414, %v381, 0
    %v471 = vsel %vm414, %v383, 0
    %v473 = vsel %vm414, %v386, 0
    %v475 = vsel %vm414, %v388, 0
    %v477 = vsel %vm414, %v391, 0
    %v479 = vsel %vm414, %v393, 0
    %v481 = vsel %vm414, %v396, 0
    %v483 = vsel %vm414, %v398, 0
    %v485 = vsel %vm414, %v401, 0
    %v487 = vsel %vm414, %v403, 0
    %v489 = vsel %vm414, %v406, 0
    %v491 = vsel %vm414, %v408, 0
    %v493 = vsel %vm414, %v411, 0
    %v495 = vsel %vm414, %v413, 0
    %497 = vmatprep.subr.mxu0 0.0
    %498 = vmatpush1.msra.mxu0 %v37
    %499 = vmatprep.subr.mxu0 0.0
    %500 = vmatpush1.msra.mxu0 %v38
    %501 = vmatprep.subr.mxu0 0.0
    %502 = vmatpush1.msra.mxu0 %v39
    %503 = vmatprep.subr.mxu0 0.0
    %504 = vmatpush1.msra.mxu0 %v40
    %505 = vmatprep.subr.mxu0 0.0
    %506 = vmatpush1.msra.mxu0 %v41
    %507 = vmatprep.subr.mxu0 0.0
    %508 = vmatpush1.msra.mxu0 %v42
    %509 = vmatprep.subr.mxu0 0.0
    %510 = vmatpush1.msra.mxu0 %v43
    %511 = vmatprep.subr.mxu0 0.0
    %512 = vmatpush1.msra.mxu0 %v44
    %513 = vmatprep.subr.mxu0 0.0
    %514 = vmatpush1.msra.mxu0 %v45
    %515 = vmatprep.subr.mxu0 0.0
    %516 = vmatpush1.msra.mxu0 %v46
    %517 = vmatprep.subr.mxu0 0.0
    %518 = vmatpush1.msra.mxu0 %v47
    %519 = vmatprep.subr.mxu0 0.0
    %520 = vmatpush1.msra.mxu0 %v48
    %521 = vmatprep.subr.mxu0 0.0
    %522 = vmatpush1.msra.mxu0 %v49
    %523 = vmatprep.subr.mxu0 0.0
    %524 = vmatpush1.msra.mxu0 %v50
    %525 = vmatprep.subr.mxu0 0.0
    %526 = vmatpush1.msra.mxu0 %v51
    %527 = vmatprep.subr.mxu0 0.0
    %528 = vmatpush1.msra.mxu0 %v52
    %529 = vmatprep.subr.mxu0 0.0
    %530 = vmatpush1.msra.mxu0 %v53
    %531 = vmatprep.subr.mxu0 0.0
    %532 = vmatpush1.msra.mxu0 %v54
    %533 = vmatprep.subr.mxu0 0.0
    %534 = vmatpush1.msra.mxu0 %v55
    %535 = vmatprep.subr.mxu0 0.0
    %536 = vmatpush1.msra.mxu0 %v56
    %537 = vmatprep.subr.mxu0 0.0
    %538 = vmatpush1.msra.mxu0 0.0
    %539 = vmatprep.subr.mxu0 0.0
    %540 = vmatpush1.msra.mxu0 0.0
    %541 = vmatprep.subr.mxu0 0.0
    %542 = vmatpush1.msra.mxu0 0.0
    %543 = vmatprep.subr.mxu0 0.0
    %544 = vmatpush1.msra.mxu0 0.0
    %545 = vmatprep.subr.mxu0 0.0
    %546 = vmatpush1.msra.mxu0 0.0
    %547 = vmatprep.subr.mxu0 0.0
    %548 = vmatpush1.msra.mxu0 0.0
    %549 = vmatprep.subr.mxu0 0.0
    %550 = vmatpush1.msra.mxu0 0.0
    %551 = vmatprep.subr.mxu0 0.0
    %552 = vmatpush1.msra.mxu0 0.0
    %553 = vmatprep.subr.mxu0 0.0
    %554 = vmatpush1.msra.mxu0 0.0
    %555 = vmatprep.subr.mxu0 0.0
    %556 = vmatpush1.msra.mxu0 0.0
    %557 = vmatprep.subr.mxu0 0.0
    %558 = vmatpush1.msra.mxu0 0.0
    %559 = vmatprep.subr.mxu0 0.0
    %560 = vmatpush1.msra.mxu0 0.0
    %561 = vmatprep.mubr.f32.mxu0 %v465
    %562 = vmatmul.mubr.f32.gmra.mrb[0].mxu0 %v449
    %v563 = vpop.f32.mrb[0].mxu0
    %v564 = vadd.f32 0.0, %v563
    %v565 = vpop.f32.mrb[0].mxu0
    %566 = vmatprep.mubr.f32.mxu0 %v467
    %567 = vmatmul.mubr.f32.gmra.mrb[0].mxu0 %v450
    %v568 = vpop.f32.mrb[0].mxu0
    %v569 = vadd.f32 0.0, %v568
    %v570 = vpop.f32.mrb[0].mxu0
    %571 = vmatprep.mubr.f32.mxu0 %v469
    %572 = vmatmul.mubr.f32.gmra.mrb[0].mxu0 %v451
    %v573 = vpop.f32.mrb[0].mxu0
    %v574 = vadd.f32 0.0, %v573
    %v575 = vpop.f32.mrb[0].mxu0
    %576 = vmatprep.mubr.f32.mxu0 %v471
    %577 = vmatmul.mubr.f32.gmra.mrb[0].mxu0 %v452
    %v578 = vpop.f32.mrb[0].mxu0
    %v579 = vadd.f32 0.0, %v578
    %v580 = vpop.f32.mrb[0].mxu0
    %581 = vmatprep.mubr.f32.mxu0 %v473
    %582 = vmatmul.mubr.f32.gmra.mrb[0].mxu0 %v453
    %v583 = vpop.f32.mrb[0].mxu0
    %v584 = vadd.f32 0.0, %v583
    %v585 = vpop.f32.mrb[0].mxu0
    %586 = vmatprep.mubr.f32.mxu0 %v475
    %587 = vmatmul.mubr.f32.gmra.mrb[0].mxu0 %v454
    %v588 = vpop.f32.mrb[0].mxu0
    %v589 = vadd.f32 0.0, %v588
    %v590 = vpop.f32.mrb[0].mxu0
    %591 = vmatprep.mubr.f32.mxu0 %v477
    %592 = vmatmul.mubr.f32.gmra.mrb[0].mxu0 %v455
    %v593 = vpop.f32.mrb[0].mxu0
    %v594 = vadd.f32 0.0, %v593
    %v595 = vpop.f32.mrb[0].mxu0
    %596 = vmatprep.mubr.f32.mxu0 %v479
    %597 = vmatmul.mubr.f32.gmra.mrb[0].mxu0 %v456
    %v598 = vpop.f32.mrb[0].mxu0
    %v599 = vadd.f32 0.0, %v598
    %v600 = vpop.f32.mrb[0].mxu0
    %601 = vmatprep.mubr.f32.mxu0 %v481
    %602 = vmatmul.mubr.f32.gmra.mrb[0].mxu0 %v457
    %v603 = vpop.f32.mrb[0].mxu0
    %v604 = vadd.f32 0.0, %v603
    %v605 = vpop.f32.mrb[0].mxu0
    %606 = vmatprep.mubr.f32.mxu0 %v483
    %607 = vmatmul.mubr.f32.gmra.mrb[0].mxu0 %v458
    %v608 = vpop.f32.mrb[0].mxu0
    %v609 = vadd.f32 0.0, %v608
    %v610 = vpop.f32.mrb[0].mxu0
    %611 = vmatprep.mubr.f32.mxu0 %v485
    %612 = vmatmul.mubr.f32.gmra.mrb[0].mxu0 %v459
    %v613 = vpop.f32.mrb[0].mxu0
    %v614 = vadd.f32 0.0, %v613
    %v615 = vpop.f32.mrb[0].mxu0
    %616 = vmatprep.mubr.f32.mxu0 %v487
    %617 = vmatmul.mubr.f32.gmra.mrb[0].mxu0 %v460
    %v618 = vpop.f32.mrb[0].mxu0
    %v619 = vadd.f32 0.0, %v618
    %v620 = vpop.f32.mrb[0].mxu0
    %621 = vmatprep.mubr.f32.mxu0 %v489
    %622 = vmatmul.mubr.f32.gmra.mrb[0].mxu0 %v461
    %v623 = vpop.f32.mrb[0].mxu0
    %v624 = vadd.f32 0.0, %v623
    %v625 = vpop.f32.mrb[0].mxu0
    %626 = vmatprep.mubr.f32.mxu0 %v491
    %627 = vmatmul.mubr.f32.gmra.mrb[0].mxu0 %v462
    %v628 = vpop.f32.mrb[0].mxu0
    %v629 = vadd.f32 0.0, %v628
    %v630 = vpop.f32.mrb[0].mxu0
    %631 = vmatprep.mubr.f32.mxu0 %v493
    %632 = vmatmul.mubr.f32.gmra.mrb[0].mxu0 %v463
    %v633 = vpop.f32.mrb[0].mxu0
    %v634 = vadd.f32 0.0, %v633
    %v635 = vpop.f32.mrb[0].mxu0
    %636 = vmatprep.mubr.f32.mxu0 %v495
    %637 = vmatmul.mubr.f32.gmra.mrb[0].mxu0 %v464
    %v638 = vpop.f32.mrb[0].mxu0
    %v639 = vadd.f32 0.0, %v638
    %v640 = vpop.f32.mrb[0].mxu0
    %641 = vdwg.mxu0
    %v643 = vlaneseq
    %v644 = vshrl.u32 %v643, 7
    %v645 = vsub.s32 0, %v644
    %v646 = vrot.slane %v57, %v645
    %v648 = vadd.f32 %v564, %v646
    %v649 = vadd.f32 %v569, %v646
    %v650 = vadd.f32 %v574, %v646
    %v651 = vadd.f32 %v579, %v646
    %v652 = vadd.f32 %v584, %v646
    %v653 = vadd.f32 %v589, %v646
    %v654 = vadd.f32 %v594, %v646
    %v655 = vadd.f32 %v599, %v646
    %v656 = vadd.f32 %v604, %v646
    %v657 = vadd.f32 %v609, %v646
    %v658 = vadd.f32 %v614, %v646
    %v659 = vadd.f32 %v619, %v646
    %v660 = vadd.f32 %v624, %v646
    %v661 = vadd.f32 %v629, %v646
    %v662 = vadd.f32 %v634, %v646
    %v663 = vadd.f32 %v639, %v646
    %v664 = vmax.f32 %v648, 0.0
    %v665 = vmax.f32 %v649, 0.0
    %v666 = vmax.f32 %v650, 0.0
    %v667 = vmax.f32 %v651, 0.0
    %v668 = vmax.f32 %v652, 0.0
    %v669 = vmax.f32 %v653, 0.0
    %v670 = vmax.f32 %v654, 0.0
    %v671 = vmax.f32 %v655, 0.0
    %v672 = vmax.f32 %v656, 0.0
    %v673 = vmax.f32 %v657, 0.0
    %v674 = vmax.f32 %v658, 0.0
    %v675 = vmax.f32 %v659, 0.0
    %v676 = vmax.f32 %v660, 0.0
    %v677 = vmax.f32 %v661, 0.0
    %v678 = vmax.f32 %v662, 0.0
    %v679 = vmax.f32 %v663, 0.0
    %v680 = vld [vmem:[%s3] sm:$0xff]
    %v681 = vld [vmem:[%s3 + $0x8] sm:$0xff]
    %v682 = vadd.f32 %v664, %v680
    %v683 = vadd.f32 %v665, %v681
    %v684 = vadd.f32 %v666, %v680
    %v685 = vadd.f32 %v667, %v681
    %v686 = vadd.f32 %v668, %v680
    %v687 = vadd.f32 %v669, %v681
    %v688 = vadd.f32 %v670, %v680
    %v689 = vadd.f32 %v671, %v681
    %v690 = vadd.f32 %v672, %v680
    %v691 = vadd.f32 %v673, %v681
    %v692 = vadd.f32 %v674, %v680
    %v693 = vadd.f32 %v675, %v681
    %v694 = vadd.f32 %v676, %v680
    %v695 = vadd.f32 %v677, %v681
    %v696 = vadd.f32 %v678, %v680
    %v697 = vadd.f32 %v679, %v681
    %v698 = vmax.f32 %v682, %v683
    %v699 = vrot.slane %v698, 4
    %v700 = vmax.f32 %v698, %v699
    %v701 = vrot.slane %v700, 2
    %v702 = vmax.f32 %v700, %v701
    %v703 = vrot.slane %v702, 1
    %v704 = vmax.f32 %v702, %v703
    %v705 = vmax.f32 %v684, %v685
    %v706 = vrot.slane %v705, 4
    %v707 = vmax.f32 %v705, %v706
    %v708 = vrot.slane %v707, 2
    %v709 = vmax.f32 %v707, %v708
    %v710 = vrot.slane %v709, 1
    %v711 = vmax.f32 %v709, %v710
    %v712 = vmax.f32 %v686, %v687
    %v713 = vrot.slane %v712, 4
    %v714 = vmax.f32 %v712, %v713
    %v715 = vrot.slane %v714, 2
    %v716 = vmax.f32 %v714, %v715
    %v717 = vrot.slane %v716, 1
    %v718 = vmax.f32 %v716, %v717
    %v719 = vmax.f32 %v688, %v689
    %v720 = vrot.slane %v719, 4
    %v721 = vmax.f32 %v719, %v720
    %v722 = vrot.slane %v721, 2
    %v723 = vmax.f32 %v721, %v722
    %v724 = vrot.slane %v723, 1
    %v725 = vmax.f32 %v723, %v724
    %v726 = vmax.f32 %v690, %v691
    %v727 = vrot.slane %v726, 4
    %v728 = vmax.f32 %v726, %v727
    %v729 = vrot.slane %v728, 2
    %v730 = vmax.f32 %v728, %v729
    %v731 = vrot.slane %v730, 1
    %v732 = vmax.f32 %v730, %v731
    %v733 = vmax.f32 %v692, %v693
    %v734 = vrot.slane %v733, 4
    %v735 = vmax.f32 %v733, %v734
    %v736 = vrot.slane %v735, 2
    %v737 = vmax.f32 %v735, %v736
    %v738 = vrot.slane %v737, 1
    %v739 = vmax.f32 %v737, %v738
    %v740 = vmax.f32 %v694, %v695
    %v741 = vrot.slane %v740, 4
    %v742 = vmax.f32 %v740, %v741
    %v743 = vrot.slane %v742, 2
    %v744 = vmax.f32 %v742, %v743
    %v745 = vrot.slane %v744, 1
    %v746 = vmax.f32 %v744, %v745
    %v747 = vmax.f32 %v696, %v697
    %v748 = vrot.slane %v747, 4
    %v749 = vmax.f32 %v747, %v748
    %v750 = vrot.slane %v749, 2
    %v751 = vmax.f32 %v749, %v750
    %v752 = vrot.slane %v751, 1
    %v753 = vmax.f32 %v751, %v752
    %v754 = vmax.f32 %v704, -1e+30
    %v755 = vmax.f32 %v711, -1e+30
    %v756 = vmax.f32 %v718, -1e+30
    %v757 = vmax.f32 %v725, -1e+30
    %v758 = vmax.f32 %v732, -1e+30
    %v759 = vmax.f32 %v739, -1e+30
    %v760 = vmax.f32 %v746, -1e+30
    %v761 = vmax.f32 %v753, -1e+30
    %v762 = vld [vmem:[#allocation2] sm:$0xff]
    %v763 = vld [vmem:[#allocation2 + $0x8] sm:$0xff]
    %v764 = vld [vmem:[#allocation2 + $0x10] sm:$0xff]
    %v765 = vld [vmem:[#allocation2 + $0x18] sm:$0xff]
    %v766 = vld [vmem:[#allocation2 + $0x20] sm:$0xff]
    %v767 = vld [vmem:[#allocation2 + $0x28] sm:$0xff]
    %v768 = vld [vmem:[#allocation2 + $0x30] sm:$0xff]
    %v769 = vld [vmem:[#allocation2 + $0x38] sm:$0xff]
    %v770 = vld [vmem:[#allocation2 + $0x40] sm:$0xff]
    %v771 = vld [vmem:[#allocation2 + $0x48] sm:$0xff]
    %v772 = vld [vmem:[#allocation2 + $0x50] sm:$0xff]
    %v773 = vld [vmem:[#allocation2 + $0x58] sm:$0xff]
    %v774 = vld [vmem:[#allocation2 + $0x60] sm:$0xff]
    %v775 = vld [vmem:[#allocation2 + $0x68] sm:$0xff]
    %v776 = vld [vmem:[#allocation2 + $0x70] sm:$0xff]
    %v777 = vld [vmem:[#allocation2 + $0x78] sm:$0xff]
    %v778 = vld [vmem:[%s5] sm:$0x1]
    %v780 = vlaneseq
    %v781 = vshrl.u32 %v780, 7
    %v782 = vsub.s32 0, %v781
    %v783 = vrot.slane %v778, %v782
    %vm793 = vcmask 1041409
    %v794 = vsel %vm793, %v755, %v754
    %vm795 = vcmask 1042434
    %v796 = vsel %vm795, %v756, %v794
    %vm797 = vcmask 1043459
    %v798 = vsel %vm797, %v757, %v796
    %vm799 = vcmask 1044484
    %v800 = vsel %vm799, %v758, %v798
    %vm801 = vcmask 1045509
    %v802 = vsel %vm801, %v759, %v800
    %vm803 = vcmask 1046534
    %v804 = vsel %vm803, %v760, %v802
    %vm805 = vcmask 1047559
    %v806 = vsel %vm805, %v761, %v804
    %808 = vmatprep.subr.mxu0 0.0
    %809 = vmatpush1.msra.mxu0 %v762
    %810 = vmatprep.subr.mxu0 0.0
    %811 = vmatpush1.msra.mxu0 %v763
    %812 = vmatprep.subr.mxu0 0.0
    %813 = vmatpush1.msra.mxu0 %v764
    %814 = vmatprep.subr.mxu0 0.0
    %815 = vmatpush1.msra.mxu0 %v765
    %816 = vmatprep.subr.mxu0 0.0
    %817 = vmatpush1.msra.mxu0 %v766
    %818 = vmatprep.subr.mxu0 0.0
    %819 = vmatpush1.msra.mxu0 %v767
    %820 = vmatprep.subr.mxu0 0.0
    %821 = vmatpush1.msra.mxu0 %v768
    %822 = vmatprep.subr.mxu0 0.0
    %823 = vmatpush1.msra.mxu0 %v769
    %824 = vmatprep.subr.mxu0 0.0
    %825 = vmatpush1.msra.mxu0 %v770
    %826 = vmatprep.subr.mxu0 0.0
    %827 = vmatpush1.msra.mxu0 %v771
    %828 = vmatprep.subr.mxu0 0.0
    %829 = vmatpush1.msra.mxu0 %v772
    %830 = vmatprep.subr.mxu0 0.0
    %831 = vmatpush1.msra.mxu0 %v773
    %832 = vmatprep.subr.mxu0 0.0
    %833 = vmatpush1.msra.mxu0 %v774
    %834 = vmatprep.subr.mxu0 0.0
    %835 = vmatpush1.msra.mxu0 %v775
    %836 = vmatprep.subr.mxu0 0.0
    %837 = vmatpush1.msra.mxu0 %v776
    %838 = vmatprep.subr.mxu0 0.0
    %839 = vmatpush1.msra.mxu0 %v777
    %840 = vmatprep.subr.mxu0 0.0
    %841 = vmatpush1.msra.mxu0 0.0
    %842 = vmatprep.subr.mxu0 0.0
    %843 = vmatpush1.msra.mxu0 0.0
    %844 = vmatprep.subr.mxu0 0.0
    %845 = vmatpush1.msra.mxu0 0.0
    %846 = vmatprep.subr.mxu0 0.0
    %847 = vmatpush1.msra.mxu0 0.0
    %848 = vmatprep.subr.mxu0 0.0
    %849 = vmatpush1.msra.mxu0 0.0
    %850 = vmatprep.subr.mxu0 0.0
    %851 = vmatpush1.msra.mxu0 0.0
    %852 = vmatprep.subr.mxu0 0.0
    %853 = vmatpush1.msra.mxu0 0.0
    %854 = vmatprep.subr.mxu0 0.0
    %855 = vmatpush1.msra.mxu0 0.0
    %856 = vmatprep.subr.mxu0 0.0
    %857 = vmatpush1.msra.mxu0 0.0
    %858 = vmatprep.subr.mxu0 0.0
    %859 = vmatpush1.msra.mxu0 0.0
    %860 = vmatprep.subr.mxu0 0.0
    %861 = vmatpush1.msra.mxu0 0.0
    %862 = vmatprep.subr.mxu0 0.0
    %863 = vmatpush1.msra.mxu0 0.0
    %864 = vmatprep.subr.mxu0 0.0
    %865 = vmatpush1.msra.mxu0 0.0
    %866 = vmatprep.subr.mxu0 0.0
    %867 = vmatpush1.msra.mxu0 0.0
    %868 = vmatprep.subr.mxu0 0.0
    %869 = vmatpush1.msra.mxu0 0.0
    %870 = vmatprep.subr.mxu0 0.0
    %871 = vmatpush1.msra.mxu0 0.0
    %872 = vmatprep.mubr.f32.mxu0 0.0
    %873 = vmatmul.mubr.f32.gmra.mrb[0].mxu0 %v806
    %v874 = vpop.f32.mrb[0].mxu0
    %v875 = vadd.f32 %v783, %v874
    %v876 = vpop.f32.mrb[0].mxu0
    %877 = vdwg.mxu0
    %878 = vst [vmem:[%s6] sm:$0xff] %v875
    // Predicated region
    $region30: #{cnn1d_forward.1} parent=1 // pred_check
      _
    $region31: #{cnn1d_forward.1} parent=1 // pred_check_branch
      %880 = sbr.rel (0) target = $region33
    $region32: #{cnn1d_forward.1} parent=1 // pred_region
      _
    $region33: #{cnn1d_forward.1} parent=1 // pred_fallthru
      _
    // Predicated region
    $region34: #{cnn1d_forward.1} parent=1 // pred_check
      _
    $region35: #{cnn1d_forward.1} parent=1 // pred_check_branch
      %882 = sbr.rel (0) target = $region37
    $region36: #{cnn1d_forward.1} parent=1 // pred_region
      _
    $region37: #{cnn1d_forward.1} parent=1 // pred_fallthru
      _
    %883 = vsyncpa [#allocation3], 1

</llo_original>
